<compile_context>
chip_gen: v6e
topology: v6e:2x2x1
jax: 0.10.0
libtpu: 0.0.40
codegen_flags: <defaults>
</compile_context>

<pallas_src>
import jax
import jax.numpy as jnp
import numpy as np
from jax.experimental import pallas as pl
from jax.experimental.pallas import tpu as pltpu

LANE = 128  # lane-dense padded feature dimension (>= max(in, hidden, out))


def _round_up(n, m):
    return (n + m - 1) // m * m


# -----------------------------------------------------------------------------
# Kernel: one batch tile, all (padded, packed) parameters resident in VMEM.
#   x_ref   : [TB, F]              f32 activations (F = 128, zero-padded)
#   w_ref   : [num_mats, F, F]     bf16 stacked weights: w0, (w1,w2)*blocks, wf
#   b_ref   : [num_mats, 1, F]     f32  stacked biases : b0, (b1,b2)*blocks, bf
#   out_ref : [TB, F]              f32 (only [:, :out_features] is meaningful)
# -----------------------------------------------------------------------------
def resnet_kernel(x_ref, w_ref, b_ref, out_ref):
    num_mats = w_ref.shape[0]
    num_blocks = (num_mats - 2) // 2

    # initial Linear (bf16 MXU inputs, f32 accumulation)
    x = x_ref[...].astype(jnp.bfloat16)
    h = jnp.dot(x, w_ref[0], preferred_element_type=jnp.float32) + b_ref[0]

    # residual blocks (static unrolled loop; per-block weights indexed statically)
    for blk in range(num_blocks):
        i1 = 1 + 2 * blk
        i2 = 2 + 2 * blk
        t = jnp.maximum(h, 0.0).astype(jnp.bfloat16)                     # ReLU
        t = jnp.dot(t, w_ref[i1], preferred_element_type=jnp.float32) + b_ref[i1]
        t = jnp.maximum(t, 0.0).astype(jnp.bfloat16)                     # ReLU
        # Dropout(p=0.0) and use_batch_norm=False are identity -> elided
        t = jnp.dot(t, w_ref[i2], preferred_element_type=jnp.float32) + b_ref[i2]
        h = h + t                                                        # residual (f32)

    # final Linear
    y = (jnp.dot(h.astype(jnp.bfloat16), w_ref[num_mats - 1],
                 preferred_element_type=jnp.float32) + b_ref[num_mats - 1])
    out_ref[...] = y.astype(out_ref.dtype)


# -----------------------------------------------------------------------------
# Wrapper: pad batch/features, set up batch grid with resident packed weights.
# -----------------------------------------------------------------------------
def residual_net_forward(x, packed_w, packed_b, out_features, *, tile_batch=128):
    B, in_f = x.shape
    F = packed_w.shape[-1]
    num_mats = packed_w.shape[0]

    B8 = _round_up(B, 8)
    TB = min(tile_batch, B8)          # batch tile (multiple of 8 sublanes)
    B_pad = _round_up(B8, TB)

    # zero-pad: batch rows and feature lanes (zero lanes stay zero through the net)
    x_pad = jnp.pad(x, ((0, B_pad - B), (0, F - in_f)))

    out = pl.pallas_call(
        resnet_kernel,
        out_shape=jax.ShapeDtypeStruct((B_pad, F), jnp.float32),
        grid_spec=pltpu.PrefetchScalarGridSpec(
            num_scalar_prefetch=0,
            grid=(B_pad // TB,),
            in_specs=[
                pl.BlockSpec((TB, F), lambda i: (i, 0)),                 # streamed x tile
                pl.BlockSpec((num_mats, F, F), lambda i: (0, 0, 0)),     # resident weights
                pl.BlockSpec((num_mats, 1, F), lambda i: (0, 0, 0)),     # resident biases
            ],
            out_specs=pl.BlockSpec((TB, F), lambda i: (i, 0)),
        ),
        compiler_params=pltpu.CompilerParams(
            dimension_semantics=("parallel",),   # 2 TCs on v7x; harmless on v5e/v6e
        ),
    )(x_pad, packed_w, packed_b)

    return out[:B, :out_features]


# -----------------------------------------------------------------------------
# Parameter construction / packing
# -----------------------------------------------------------------------------
def init_params(key, in_features, hidden_features, out_features, num_blocks):
    """Deterministic synthetic parameter init (mirrors PyTorch Linear init;
    block output layers use U(-0.001, 0.001) like zero_initialization=True)."""
    keys = jax.random.split(key, 4)

    def linear(k, fan_in, shape_w, shape_b):
        bound = 1.0 / np.sqrt(fan_in)
        kw, kb = jax.random.split(k)
        w = jax.random.uniform(kw, shape_w, jnp.float32, -bound, bound)
        b = jax.random.uniform(kb, shape_b, jnp.float32, -bound, bound)
        return w, b

    H = hidden_features
    w0, b0 = linear(keys[0], in_features, (in_features, H), (1, H))
    w1, b1 = linear(keys[1], H, (num_blocks, H, H), (num_blocks, 1, H))
    kw2, kb2 = jax.random.split(keys[2])
    w2 = jax.random.uniform(kw2, (num_blocks, H, H), jnp.float32, -0.001, 0.001)
    b2 = jax.random.uniform(kb2, (num_blocks, 1, H), jnp.float32, -0.001, 0.001)
    wf, bf = linear(keys[3], H, (H, out_features), (1, out_features))
    return dict(w0=w0, b0=b0, w1=w1, b1=b1, w2=w2, b2=b2, wf=wf, bf=bf)


def pack_params(params, lane=LANE):
    """Pack all layer params into two lane-aligned buffers:
       weights -> [num_mats, lane, lane] bf16, biases -> [num_mats, 1, lane] f32."""
    def pad_w(w):
        return jnp.pad(w, ((0, lane - w.shape[0]), (0, lane - w.shape[1])))

    def pad_b(b):
        return jnp.pad(b, ((0, 0), (0, lane - b.shape[1])))

    mats = [params["w0"]]
    biases = [params["b0"]]
    num_blocks = params["w1"].shape[0]
    for blk in range(num_blocks):
        mats += [params["w1"][blk], params["w2"][blk]]
        biases += [params["b1"][blk], params["b2"][blk]]
    mats += [params["wf"]]
    biases += [params["bf"]]

    packed_w = jnp.stack([pad_w(w) for w in mats]).astype(jnp.bfloat16)
    packed_b = jnp.stack([pad_b(b) for b in biases]).astype(jnp.float32)
    return packed_w, packed_b


# -----------------------------------------------------------------------------
# Pure-JAX reference (same bf16-input / f32-accumulate recipe as the kernel)
# -----------------------------------------------------------------------------
def reference_forward(x, p):
    def mm(a, w):
        return jnp.dot(a.astype(jnp.bfloat16), w.astype(jnp.bfloat16),
                       preferred_element_type=jnp.float32)

    h = mm(x, p["w0"]) + p["b0"]
    for blk in range(p["w1"].shape[0]):
        t = mm(jnp.maximum(h, 0.0), p["w1"][blk]) + p["b1"][blk]
        t = mm(jnp.maximum(t, 0.0), p["w2"][blk]) + p["b2"][blk]
        h = h + t
    return mm(h, p["wf"]) + p["bf"]


if __name__ == "__main__":
    # small shapes consistent with the module's forward (1-D feature inputs)
    batch = 8
    in_features = 16
    hidden_features = 32
    out_features = 8
    num_blocks = 2

    key = jax.random.PRNGKey(0)
    k_x, k_p = jax.random.split(key)
    x = jax.random.normal(k_x, (batch, in_features), jnp.float32)
    params = init_params(k_p, in_features, hidden_features, out_features, num_blocks)
    packed_w, packed_b = pack_params(params)

    y = residual_net_forward(x, packed_w, packed_b, out_features)
    y = jax.block_until_ready(y)

    y_ref = reference_forward(x, params)
    np.testing.assert_allclose(np.asarray(y), np.asarray(y_ref), rtol=2e-3, atol=2e-3)

    print("KERNEL_OK")
</pallas_src>

<mosaic_0001>
module attributes {stable_mosaic.version = 11 : i64} {
  func.func @resnet_kernel(%arg0: i32, %arg1: memref<8x128xf32, #tpu.memory_space<vmem>>, %arg2: memref<6x128x128xbf16, #tpu.memory_space<vmem>>, %arg3: memref<6x1x128xf32, #tpu.memory_space<vmem>>, %arg4: memref<8x128xf32, #tpu.memory_space<vmem>>) attributes {dimension_semantics = [#tpu.dimension_semantics<parallel>], iteration_bounds = array<i64: 1>, scalar_prefetch = 0 : i64, scratch_operands = 0 : i64, tpu.core_type = #tpu.core_type<tc>, window_params = [{transform_indices = @transform_0, window_bounds = array<i64: 8, 128>}, {pipeline_mode = #tpu.pipeline_mode<synchronous>, transform_indices = @transform_1, window_bounds = array<i64: 6, 128, 128>}, {pipeline_mode = #tpu.pipeline_mode<synchronous>, transform_indices = @transform_2, window_bounds = array<i64: 6, 1, 128>}, {transform_indices = @transform_3, window_bounds = array<i64: 8, 128>}]} {
    %c0 = arith.constant 0 : index
    %c0_0 = arith.constant 0 : index
    %0 = vector.load %arg1[%c0, %c0_0] : memref<8x128xf32, #tpu.memory_space<vmem>>, vector<8x128xf32>
    %1 = arith.truncf %0 : vector<8x128xf32> to vector<8x128xbf16>
    %c0_1 = arith.constant 0 : index
    %c0_2 = arith.constant 0 : index
    %c0_3 = arith.constant 0 : index
    %2 = vector.load %arg2[%c0_1, %c0_2, %c0_3] : memref<6x128x128xbf16, #tpu.memory_space<vmem>>, vector<1x128x128xbf16>
    %3 = vector.shape_cast %2 : vector<1x128x128xbf16> to vector<128x128xbf16>
    %cst = arith.constant dense<0.000000e+00> : vector<8x128xf32>
    %4 = tpu.matmul %1, %3, %cst {dimension_numbers = #tpu.dot_dimension_numbers<[1], [0], [0], [1], [0, 0, 1, 1], [], []>} : vector<8x128xbf16>, vector<128x128xbf16>, vector<8x128xf32> -> vector<8x128xf32>
    %c0_4 = arith.constant 0 : index
    %c0_5 = arith.constant 0 : index
    %c0_6 = arith.constant 0 : index
    %5 = vector.load %arg3[%c0_4, %c0_5, %c0_6] : memref<6x1x128xf32, #tpu.memory_space<vmem>>, vector<1x1x128xf32>
    %6 = vector.shape_cast %5 : vector<1x1x128xf32> to vector<1x128xf32>
    %7 = vector.broadcast %6 : vector<1x128xf32> to vector<8x128xf32>
    %8 = arith.addf %4, %7 : vector<8x128xf32>
    %cst_7 = arith.constant 0.000000e+00 : f32
    %9 = vector.broadcast %cst_7 : f32 to vector<8x128xf32>
    %10 = arith.maximumf %8, %9 : vector<8x128xf32>
    %11 = arith.truncf %10 : vector<8x128xf32> to vector<8x128xbf16>
    %c1 = arith.constant 1 : index
    %c0_8 = arith.constant 0 : index
    %c0_9 = arith.constant 0 : index
    %12 = vector.load %arg2[%c1, %c0_8, %c0_9] : memref<6x128x128xbf16, #tpu.memory_space<vmem>>, vector<1x128x128xbf16>
    %13 = vector.shape_cast %12 : vector<1x128x128xbf16> to vector<128x128xbf16>
    %cst_10 = arith.constant dense<0.000000e+00> : vector<8x128xf32>
    %14 = tpu.matmul %11, %13, %cst_10 {dimension_numbers = #tpu.dot_dimension_numbers<[1], [0], [0], [1], [0, 0, 1, 1], [], []>} : vector<8x128xbf16>, vector<128x128xbf16>, vector<8x128xf32> -> vector<8x128xf32>
    %c1_11 = arith.constant 1 : index
    %c0_12 = arith.constant 0 : index
    %c0_13 = arith.constant 0 : index
    %15 = vector.load %arg3[%c1_11, %c0_12, %c0_13] : memref<6x1x128xf32, #tpu.memory_space<vmem>>, vector<1x1x128xf32>
    %16 = vector.shape_cast %15 : vector<1x1x128xf32> to vector<1x128xf32>
    %17 = vector.broadcast %16 : vector<1x128xf32> to vector<8x128xf32>
    %18 = arith.addf %14, %17 : vector<8x128xf32>
    %cst_14 = arith.constant 0.000000e+00 : f32
    %19 = vector.broadcast %cst_14 : f32 to vector<8x128xf32>
    %20 = arith.maximumf %18, %19 : vector<8x128xf32>
    %21 = arith.truncf %20 : vector<8x128xf32> to vector<8x128xbf16>
    %c2 = arith.constant 2 : index
    %c0_15 = arith.constant 0 : index
    %c0_16 = arith.constant 0 : index
    %22 = vector.load %arg2[%c2, %c0_15, %c0_16] : memref<6x128x128xbf16, #tpu.memory_space<vmem>>, vector<1x128x128xbf16>
    %23 = vector.shape_cast %22 : vector<1x128x128xbf16> to vector<128x128xbf16>
    %cst_17 = arith.constant dense<0.000000e+00> : vector<8x128xf32>
    %24 = tpu.matmul %21, %23, %cst_17 {dimension_numbers = #tpu.dot_dimension_numbers<[1], [0], [0], [1], [0, 0, 1, 1], [], []>} : vector<8x128xbf16>, vector<128x128xbf16>, vector<8x128xf32> -> vector<8x128xf32>
    %c2_18 = arith.constant 2 : index
    %c0_19 = arith.constant 0 : index
    %c0_20 = arith.constant 0 : index
    %25 = vector.load %arg3[%c2_18, %c0_19, %c0_20] : memref<6x1x128xf32, #tpu.memory_space<vmem>>, vector<1x1x128xf32>
    %26 = vector.shape_cast %25 : vector<1x1x128xf32> to vector<1x128xf32>
    %27 = vector.broadcast %26 : vector<1x128xf32> to vector<8x128xf32>
    %28 = arith.addf %24, %27 : vector<8x128xf32>
    %29 = arith.addf %8, %28 : vector<8x128xf32>
    %cst_21 = arith.constant 0.000000e+00 : f32
    %30 = vector.broadcast %cst_21 : f32 to vector<8x128xf32>
    %31 = arith.maximumf %29, %30 : vector<8x128xf32>
    %32 = arith.truncf %31 : vector<8x128xf32> to vector<8x128xbf16>
    %c3 = arith.constant 3 : index
    %c0_22 = arith.constant 0 : index
    %c0_23 = arith.constant 0 : index
    %33 = vector.load %arg2[%c3, %c0_22, %c0_23] : memref<6x128x128xbf16, #tpu.memory_space<vmem>>, vector<1x128x128xbf16>
    %34 = vector.shape_cast %33 : vector<1x128x128xbf16> to vector<128x128xbf16>
    %cst_24 = arith.constant dense<0.000000e+00> : vector<8x128xf32>
    %35 = tpu.matmul %32, %34, %cst_24 {dimension_numbers = #tpu.dot_dimension_numbers<[1], [0], [0], [1], [0, 0, 1, 1], [], []>} : vector<8x128xbf16>, vector<128x128xbf16>, vector<8x128xf32> -> vector<8x128xf32>
    %c3_25 = arith.constant 3 : index
    %c0_26 = arith.constant 0 : index
    %c0_27 = arith.constant 0 : index
    %36 = vector.load %arg3[%c3_25, %c0_26, %c0_27] : memref<6x1x128xf32, #tpu.memory_space<vmem>>, vector<1x1x128xf32>
    %37 = vector.shape_cast %36 : vector<1x1x128xf32> to vector<1x128xf32>
    %38 = vector.broadcast %37 : vector<1x128xf32> to vector<8x128xf32>
    %39 = arith.addf %35, %38 : vector<8x128xf32>
    %cst_28 = arith.constant 0.000000e+00 : f32
    %40 = vector.broadcast %cst_28 : f32 to vector<8x128xf32>
    %41 = arith.maximumf %39, %40 : vector<8x128xf32>
    %42 = arith.truncf %41 : vector<8x128xf32> to vector<8x128xbf16>
    %c4 = arith.constant 4 : index
    %c0_29 = arith.constant 0 : index
    %c0_30 = arith.constant 0 : index
    %43 = vector.load %arg2[%c4, %c0_29, %c0_30] : memref<6x128x128xbf16, #tpu.memory_space<vmem>>, vector<1x128x128xbf16>
    %44 = vector.shape_cast %43 : vector<1x128x128xbf16> to vector<128x128xbf16>
    %cst_31 = arith.constant dense<0.000000e+00> : vector<8x128xf32>
    %45 = tpu.matmul %42, %44, %cst_31 {dimension_numbers = #tpu.dot_dimension_numbers<[1], [0], [0], [1], [0, 0, 1, 1], [], []>} : vector<8x128xbf16>, vector<128x128xbf16>, vector<8x128xf32> -> vector<8x128xf32>
    %c4_32 = arith.constant 4 : index
    %c0_33 = arith.constant 0 : index
    %c0_34 = arith.constant 0 : index
    %46 = vector.load %arg3[%c4_32, %c0_33, %c0_34] : memref<6x1x128xf32, #tpu.memory_space<vmem>>, vector<1x1x128xf32>
    %47 = vector.shape_cast %46 : vector<1x1x128xf32> to vector<1x128xf32>
    %48 = vector.broadcast %47 : vector<1x128xf32> to vector<8x128xf32>
    %49 = arith.addf %45, %48 : vector<8x128xf32>
    %50 = arith.addf %29, %49 : vector<8x128xf32>
    %51 = arith.truncf %50 : vector<8x128xf32> to vector<8x128xbf16>
    %c5 = arith.constant 5 : index
    %c0_35 = arith.constant 0 : index
    %c0_36 = arith.constant 0 : index
    %52 = vector.load %arg2[%c5, %c0_35, %c0_36] : memref<6x128x128xbf16, #tpu.memory_space<vmem>>, vector<1x128x128xbf16>
    %53 = vector.shape_cast %52 : vector<1x128x128xbf16> to vector<128x128xbf16>
    %cst_37 = arith.constant dense<0.000000e+00> : vector<8x128xf32>
    %54 = tpu.matmul %51, %53, %cst_37 {dimension_numbers = #tpu.dot_dimension_numbers<[1], [0], [0], [1], [0, 0, 1, 1], [], []>} : vector<8x128xbf16>, vector<128x128xbf16>, vector<8x128xf32> -> vector<8x128xf32>
    %c5_38 = arith.constant 5 : index
    %c0_39 = arith.constant 0 : index
    %c0_40 = arith.constant 0 : index
    %55 = vector.load %arg3[%c5_38, %c0_39, %c0_40] : memref<6x1x128xf32, #tpu.memory_space<vmem>>, vector<1x1x128xf32>
    %56 = vector.shape_cast %55 : vector<1x1x128xf32> to vector<1x128xf32>
    %57 = vector.broadcast %56 : vector<1x128xf32> to vector<8x128xf32>
    %58 = arith.addf %54, %57 : vector<8x128xf32>
    %c0_41 = arith.constant 0 : index
    %c0_42 = arith.constant 0 : index
    %59 = vector.load %arg4[%c0_41, %c0_42] : memref<8x128xf32, #tpu.memory_space<vmem>>, vector<8x128xf32>
    tpu.vector_store %arg4[%c0_41, %c0_42], %58 {strides = array<i32>} : memref<8x128xf32, #tpu.memory_space<vmem>>, vector<8x128xf32>,
    return
  }
  func.func @transform_0(%arg0: i32) -> (i32, i32) {
    %c0_i32 = arith.constant 0 : i32
    %c0_i32_0 = arith.constant 0 : i32
    return %arg0, %c0_i32 : i32, i32
  }
  func.func @transform_1(%arg0: i32) -> (i32, i32, i32) {
    %c0_i32 = arith.constant 0 : i32
    %c0_i32_0 = arith.constant 0 : i32
    %c0_i32_1 = arith.constant 0 : i32
    %c0_i32_2 = arith.constant 0 : i32
    return %c0_i32, %c0_i32_0, %c0_i32_1 : i32, i32, i32
  }
  func.func @transform_2(%arg0: i32) -> (i32, i32, i32) {
    %c0_i32 = arith.constant 0 : i32
    %c0_i32_0 = arith.constant 0 : i32
    %c0_i32_1 = arith.constant 0 : i32
    %c0_i32_2 = arith.constant 0 : i32
    return %c0_i32, %c0_i32_0, %c0_i32_1 : i32, i32, i32
  }
  func.func @transform_3(%arg0: i32) -> (i32, i32) {
    %c0_i32 = arith.constant 0 : i32
    %c0_i32_0 = arith.constant 0 : i32
    return %arg0, %c0_i32 : i32, i32
  }
}

</mosaic_0001>

<llo_original>
// kernel: tpu_custom_call.1
$region0: #{tpu_custom_call.1}
  #allocation0 [shape = 'u32[]', space=smem, size = 0x4, offset = 0x4, fixed_abs, tag = 'smem constant byte address 0x4 - core index']
  #allocation1 [shape = 'u32[144,128]{1,0:T(1,128)}', space=vmem, size = 0x12000, scoped, tag = 'internal scratch']
  %s0 = inlined_call_operand.hbm [shape: f32[8,128], index: 0, kind: input, shape index: {}]
  %s1 = inlined_call_operand.hbm [shape: bf16[6,128,128], index: 1, kind: input, shape index: {}]
  %s2 = inlined_call_operand.hbm [shape: f32[6,1,128], index: 2, kind: input, shape index: {}]
  %s3 = inlined_call_operand.hbm [shape: f32[8,128], index: 3, kind: output, shape index: {}]
  %s4 = sld [smem:[#allocation0]]
  $region34: #{tpu_custom_call.1} parent=0
    _
  %s6 = ssub.s32 1, %s4
  %s7 = scalar_select 0, %s6, %s4
  $region1: #{tpu_custom_call.1} parent=0
    #allocation2 [shape = 'u8[4096]{0}', space=vmem, size = 0x1000, scoped, tag = 'input window, operand 0, single buffered']
    #allocation3 [shape = 's32[1]{0}', space=sflag, size = 0x4, scoped, tag = 'scoped memory for tpu_custom_call.1']
    #allocation4 [shape = 's32[1]{0}', space=sflag, size = 0x4, scoped, tag = 'scoped memory for tpu_custom_call.1']
    #allocation5 [shape = 'u8[196608]{0}', space=vmem, size = 0x30000, scoped, tag = 'input window, operand 1, single buffered']
    #allocation6 [shape = 's32[1]{0}', space=sflag, size = 0x4, scoped, tag = 'scoped memory for tpu_custom_call.1']
    #allocation7 [shape = 'u8[3072]{0}', space=vmem, size = 0xc00, scoped, tag = 'input window, operand 2, single buffered']
    #allocation8 [shape = 'u8[4096]{0}', space=vmem, size = 0x1000, scoped, tag = 'output window, operand 0, single buffered']
    %8 = vsyncpa [#allocation3], 0
    %9 = vsyncpa [#allocation6], 0
    %10 = vsyncpa [#allocation4], 0
    // Predicated region
    $region2: #{tpu_custom_call.1} parent=1 // pred_check
      _
    $region3: #{tpu_custom_call.1} parent=1 // pred_check_branch
      %12 = sbr.rel (0) target = $region5
    $region4: #{tpu_custom_call.1} parent=1 // pred_region
      %s14 = ssub.s32 128, 128
      %15 = vsyncadd [#allocation3], %s14
      %s17 = sshll.u32 [#allocation2], 4
      %s18 = int_to_ptr.vmem [resolvable:$true] %s17
      %20 = dma.hbm_to_vmem [thread:$0]  %s0, 128, %s18, [#allocation3]
    $region5: #{tpu_custom_call.1} parent=1 // pred_fallthru
      _
    // Predicated region
    $region6: #{tpu_custom_call.1} parent=1 // pred_check
      _
    $region7: #{tpu_custom_call.1} parent=1 // pred_check_branch
      %22 = sbr.rel (0) target = $region9
    $region8: #{tpu_custom_call.1} parent=1 // pred_region
      %s24 = ssub.s32 6144, 6144
      %25 = vsyncadd [#allocation6], %s24
      %s26 = sshll.u32 [#allocation5], 4
      %s27 = int_to_ptr.vmem [resolvable:$true] %s26
      %32 = dma.hbm_to_vmem [thread:$0]  %s1, 6144, %s27, [#allocation6], 64, 64, 4
    $region9: #{tpu_custom_call.1} parent=1 // pred_fallthru
      _
    // Predicated region
    $region10: #{tpu_custom_call.1} parent=1 // pred_check
      _
    $region11: #{tpu_custom_call.1} parent=1 // pred_check_branch
      %34 = sbr.rel (0) target = $region13
    $region12: #{tpu_custom_call.1} parent=1 // pred_region
      %s36 = ssub.s32 96, 96
      %37 = vsyncadd [#allocation6], %s36
      %s38 = sshll.u32 [#allocation7], 4
      %s39 = int_to_ptr.vmem [resolvable:$true] %s38
      %44 = dma.hbm_to_vmem [thread:$0]  %s2, 96, %s39, [#allocation6], 16, 16, 1
    $region13: #{tpu_custom_call.1} parent=1 // pred_fallthru
      _
    // Predicated region
    $region14: #{tpu_custom_call.1} parent=1 // pred_check
      _
    $region15: #{tpu_custom_call.1} parent=1 // pred_check_branch
      %46 = sbr.rel (0) target = $region17
    $region16: #{tpu_custom_call.1} parent=1 // pred_region
      %47 = dma.done [#allocation3], 128
    $region17: #{tpu_custom_call.1} parent=1 // pred_fallthru
      _
    // Predicated region
    $region18: #{tpu_custom_call.1} parent=1 // pred_check
      _
    $region19: #{tpu_custom_call.1} parent=1 // pred_check_branch
      %49 = sbr.rel (0) target = $region21
    $region20: #{tpu_custom_call.1} parent=1 // pred_region
      %50 = dma.done [#allocation6], 6144
    $region21: #{tpu_custom_call.1} parent=1 // pred_fallthru
      _
    // Predicated region
    $region22: #{tpu_custom_call.1} parent=1 // pred_check
      _
    $region23: #{tpu_custom_call.1} parent=1 // pred_check_branch
      %52 = sbr.rel (0) target = $region25
    $region24: #{tpu_custom_call.1} parent=1 // pred_region
      %53 = dma.done [#allocation6], 96
    $region25: #{tpu_custom_call.1} parent=1 // pred_fallthru
      _
    %v55 = vld [vmem:[#allocation2] sm:$0xff]
    %v56 = vpack.c.bf16 %v55, %v55
    %v57 = vld [vmem:[#allocation5] sm:$0xf]
    %v58 = vld [vmem:[#allocation5 + $0x4] sm:$0xf]
    %v59 = vld [vmem:[#allocation5 + $0x8] sm:$0xf]
    %v60 = vld [vmem:[#allocation5 + $0xc] sm:$0xf]
    %v61 = vld [vmem:[#allocation5 + $0x10] sm:$0xf]
    %v62 = vld [vmem:[#allocation5 + $0x14] sm:$0xf]
    %v63 = vld [vmem:[#allocation5 + $0x18] sm:$0xf]
    %v64 = vld [vmem:[#allocation5 + $0x1c] sm:$0xf]
    %v65 = vld [vmem:[#allocation5 + $0x20] sm:$0xf]
    %v66 = vld [vmem:[#allocation5 + $0x24] sm:$0xf]
    %v67 = vld [vmem:[#allocation5 + $0x28] sm:$0xf]
    %v68 = vld [vmem:[#allocation5 + $0x2c] sm:$0xf]
    %v69 = vld [vmem:[#allocation5 + $0x30] sm:$0xf]
    %v70 = vld [vmem:[#allocation5 + $0x34] sm:$0xf]
    %v71 = vld [vmem:[#allocation5 + $0x38] sm:$0xf]
    %v72 = vld [vmem:[#allocation5 + $0x3c] sm:$0xf]
    %v73 = vld [vmem:[#allocation7] sm:$0x1]
    %v75 = vlaneseq
    %v76 = vshrl.u32 %v75, 7
    %v77 = vsub.s32 0, %v76
    %v78 = vrot.slane %v73, %v77
    %v96 = vunpack.c.l.b16 %v57
    %v97 = vunpack.c.l.b16 %v58
    %v98 = vunpack.c.l.b16 %v59
    %v99 = vunpack.c.l.b16 %v60
    %v100 = vunpack.c.l.b16 %v61
    %v101 = vunpack.c.l.b16 %v62
    %v102 = vunpack.c.l.b16 %v63
    %v103 = vunpack.c.l.b16 %v64
    %v104 = vunpack.c.l.b16 %v65
    %v105 = vunpack.c.l.b16 %v66
    %v106 = vunpack.c.l.b16 %v67
    %v107 = vunpack.c.l.b16 %v68
    %v108 = vunpack.c.l.b16 %v69
    %v109 = vunpack.c.l.b16 %v70
    %v110 = vunpack.c.l.b16 %v71
    %v111 = vunpack.c.l.b16 %v72
    %v112 = vpack.c.b16 %v97, %v96
    %v113 = vpack.c.b16 %v99, %v98
    %v114 = vpack.c.b16 %v101, %v100
    %v115 = vpack.c.b16 %v103, %v102
    %v116 = vpack.c.b16 %v105, %v104
    %v117 = vpack.c.b16 %v107, %v106
    %v118 = vpack.c.b16 %v109, %v108
    %v119 = vpack.c.b16 %v111, %v110
    %128 = vmatprep.subr.bf16.mxu0 0
    %129 = vmatpush1.bf16.msra.mxu0 %v119
    %130 = vmatprep.subr.bf16.mxu0 0
    %131 = vmatpush1.bf16.msra.mxu0 %v118
    %132 = vmatprep.subr.bf16.mxu0 0
    %133 = vmatpush1.bf16.msra.mxu0 %v117
    %134 = vmatprep.subr.bf16.mxu0 0
    %135 = vmatpush1.bf16.msra.mxu0 %v116
    %136 = vmatprep.subr.bf16.mxu0 0
    %137 = vmatpush1.bf16.msra.mxu0 %v115
    %138 = vmatprep.subr.bf16.mxu0 0
    %139 = vmatpush1.bf16.msra.mxu0 %v114
    %140 = vmatprep.subr.bf16.mxu0 0
    %141 = vmatpush1.bf16.msra.mxu0 %v113
    %142 = vmatprep.subr.bf16.mxu0 0
    %143 = vmatpush1.bf16.msra.mxu0 %v112
    %144 = vmatprep.subr.bf16.mxu0 0
    %145 = vmatpush2.bf16.msra.mxu0 0
    %146 = vmatprep.subr.bf16.mxu0 0
    %147 = vmatpush2.bf16.msra.mxu0 0
    %148 = vmatprep.subr.bf16.mxu0 0
    %149 = vmatpush2.bf16.msra.mxu0 0
    %150 = vmatprep.subr.bf16.mxu0 0
    %151 = vmatpush2.bf16.msra.mxu0 0
    %152 = vmatprep.subr.bf16.mxu0 0
    %153 = vmatpush2.bf16.msra.mxu0 0
    %154 = vmatprep.subr.bf16.mxu0 0
    %155 = vmatpush2.bf16.msra.mxu0 0
    %156 = vmatprep.subr.bf16.mxu0 0
    %157 = vmatpush2.bf16.msra.mxu0 0
    %158 = vmatprep.subr.bf16.mxu0 0
    %159 = vmatpush2.bf16.msra.mxu0 0
    %160 = vmatprep.mubr.bf16.mxu0 0
    %161 = vmatmul.mubr.bf16.gmra.mxu0 %v56
    %v162 = vpop.f32.mrf.mxu0
    %v163 = vadd.f32 %v78, %v162
    %v164 = vpop.f32.mrf.mxu0
    %v165 = vpop.f32.mrf.mxu0
    %v166 = vpop.f32.mrf.mxu0
    %167 = vdwg.mxu0
    %v168 = vmax.f32 %v163, 0.0
    %v169 = vpack.c.bf16 %v168, %v168
    %s170 = scalar_lea.vmem [#allocation5], 64
    %v171 = vld [vmem:[%s170] sm:$0xf]
    %v172 = vld [vmem:[%s170 + $0x4] sm:$0xf]
    %v173 = vld [vmem:[%s170 + $0x8] sm:$0xf]
    %v174 = vld [vmem:[%s170 + $0xc] sm:$0xf]
    %v175 = vld [vmem:[%s170 + $0x10] sm:$0xf]
    %v176 = vld [vmem:[%s170 + $0x14] sm:$0xf]
    %v177 = vld [vmem:[%s170 + $0x18] sm:$0xf]
    %v178 = vld [vmem:[%s170 + $0x1c] sm:$0xf]
    %v179 = vld [vmem:[%s170 + $0x20] sm:$0xf]
    %v180 = vld [vmem:[%s170 + $0x24] sm:$0xf]
    %v181 = vld [vmem:[%s170 + $0x28] sm:$0xf]
    %v182 = vld [vmem:[%s170 + $0x2c] sm:$0xf]
    %v183 = vld [vmem:[%s170 + $0x30] sm:$0xf]
    %v184 = vld [vmem:[%s170 + $0x34] sm:$0xf]
    %v185 = vld [vmem:[%s170 + $0x38] sm:$0xf]
    %v186 = vld [vmem:[%s170 + $0x3c] sm:$0xf]
    %s187 = scalar_lea.vmem [#allocation7], 1
    %v188 = vld [vmem:[%s187] sm:$0x1]
    %v190 = vlaneseq
    %v191 = vshrl.u32 %v190, 7
    %v192 = vsub.s32 0, %v191
    %v193 = vrot.slane %v188, %v192
    %v211 = vunpack.c.l.b16 %v171
    %v212 = vunpack.c.l.b16 %v172
    %v213 = vunpack.c.l.b16 %v173
    %v214 = vunpack.c.l.b16 %v174
    %v215 = vunpack.c.l.b16 %v175
    %v216 = vunpack.c.l.b16 %v176
    %v217 = vunpack.c.l.b16 %v177
    %v218 = vunpack.c.l.b16 %v178
    %v219 = vunpack.c.l.b16 %v179
    %v220 = vunpack.c.l.b16 %v180
    %v221 = vunpack.c.l.b16 %v181
    %v222 = vunpack.c.l.b16 %v182
    %v223 = vunpack.c.l.b16 %v183
    %v224 = vunpack.c.l.b16 %v184
    %v225 = vunpack.c.l.b16 %v185
    %v226 = vunpack.c.l.b16 %v186
    %v227 = vpack.c.b16 %v212, %v211
    %v228 = vpack.c.b16 %v214, %v213
    %v229 = vpack.c.b16 %v216, %v215
    %v230 = vpack.c.b16 %v218, %v217
    %v231 = vpack.c.b16 %v220, %v219
    %v232 = vpack.c.b16 %v222, %v221
    %v233 = vpack.c.b16 %v224, %v223
    %v234 = vpack.c.b16 %v226, %v225
    %243 = vmatprep.subr.bf16.mxu0 0
    %244 = vmatpush1.bf16.msra.mxu0 %v234
    %245 = vmatprep.subr.bf16.mxu0 0
    %246 = vmatpush1.bf16.msra.mxu0 %v233
    %247 = vmatprep.subr.bf16.mxu0 0
    %248 = vmatpush1.bf16.msra.mxu0 %v232
    %249 = vmatprep.subr.bf16.mxu0 0
    %250 = vmatpush1.bf16.msra.mxu0 %v231
    %251 = vmatprep.subr.bf16.mxu0 0
    %252 = vmatpush1.bf16.msra.mxu0 %v230
    %253 = vmatprep.subr.bf16.mxu0 0
    %254 = vmatpush1.bf16.msra.mxu0 %v229
    %255 = vmatprep.subr.bf16.mxu0 0
    %256 = vmatpush1.bf16.msra.mxu0 %v228
    %257 = vmatprep.subr.bf16.mxu0 0
    %258 = vmatpush1.bf16.msra.mxu0 %v227
    %259 = vmatprep.subr.bf16.mxu0 0
    %260 = vmatpush2.bf16.msra.mxu0 0
    %261 = vmatprep.subr.bf16.mxu0 0
    %262 = vmatpush2.bf16.msra.mxu0 0
    %263 = vmatprep.subr.bf16.mxu0 0
    %264 = vmatpush2.bf16.msra.mxu0 0
    %265 = vmatprep.subr.bf16.mxu0 0
    %266 = vmatpush2.bf16.msra.mxu0 0
    %267 = vmatprep.subr.bf16.mxu0 0
    %268 = vmatpush2.bf16.msra.mxu0 0
    %269 = vmatprep.subr.bf16.mxu0 0
    %270 = vmatpush2.bf16.msra.mxu0 0
    %271 = vmatprep.subr.bf16.mxu0 0
    %272 = vmatpush2.bf16.msra.mxu0 0
    %273 = vmatprep.subr.bf16.mxu0 0
    %274 = vmatpush2.bf16.msra.mxu0 0
    %275 = vmatprep.mubr.bf16.mxu0 0
    %276 = vmatmul.mubr.bf16.gmra.mxu0 %v169
    %v277 = vpop.f32.mrf.mxu0
    %v278 = vadd.f32 %v193, %v277
    %v279 = vpop.f32.mrf.mxu0
    %v280 = vpop.f32.mrf.mxu0
    %v281 = vpop.f32.mrf.mxu0
    %282 = vdwg.mxu0
    %v283 = vmax.f32 %v278, 0.0
    %v284 = vpack.c.bf16 %v283, %v283
    %s285 = scalar_lea.vmem [#allocation5], 128
    %v286 = vld [vmem:[%s285] sm:$0xf]
    %v287 = vld [vmem:[%s285 + $0x4] sm:$0xf]
    %v288 = vld [vmem:[%s285 + $0x8] sm:$0xf]
    %v289 = vld [vmem:[%s285 + $0xc] sm:$0xf]
    %v290 = vld [vmem:[%s285 + $0x10] sm:$0xf]
    %v291 = vld [vmem:[%s285 + $0x14] sm:$0xf]
    %v292 = vld [vmem:[%s285 + $0x18] sm:$0xf]
    %v293 = vld [vmem:[%s285 + $0x1c] sm:$0xf]
    %v294 = vld [vmem:[%s285 + $0x20] sm:$0xf]
    %v295 = vld [vmem:[%s285 + $0x24] sm:$0xf]
    %v296 = vld [vmem:[%s285 + $0x28] sm:$0xf]
    %v297 = vld [vmem:[%s285 + $0x2c] sm:$0xf]
    %v298 = vld [vmem:[%s285 + $0x30] sm:$0xf]
    %v299 = vld [vmem:[%s285 + $0x34] sm:$0xf]
    %v300 = vld [vmem:[%s285 + $0x38] sm:$0xf]
    %v301 = vld [vmem:[%s285 + $0x3c] sm:$0xf]
    %s302 = scalar_lea.vmem [#allocation7], 2
    %v303 = vld [vmem:[%s302] sm:$0x1]
    %v305 = vlaneseq
    %v306 = vshrl.u32 %v305, 7
    %v307 = vsub.s32 0, %v306
    %v308 = vrot.slane %v303, %v307
    %v326 = vunpack.c.l.b16 %v286
    %v327 = vunpack.c.l.b16 %v287
    %v328 = vunpack.c.l.b16 %v288
    %v329 = vunpack.c.l.b16 %v289
    %v330 = vunpack.c.l.b16 %v290
    %v331 = vunpack.c.l.b16 %v291
    %v332 = vunpack.c.l.b16 %v292
    %v333 = vunpack.c.l.b16 %v293
    %v334 = vunpack.c.l.b16 %v294
    %v335 = vunpack.c.l.b16 %v295
    %v336 = vunpack.c.l.b16 %v296
    %v337 = vunpack.c.l.b16 %v297
    %v338 = vunpack.c.l.b16 %v298
    %v339 = vunpack.c.l.b16 %v299
    %v340 = vunpack.c.l.b16 %v300
    %v341 = vunpack.c.l.b16 %v301
    %v342 = vpack.c.b16 %v327, %v326
    %v343 = vpack.c.b16 %v329, %v328
    %v344 = vpack.c.b16 %v331, %v330
    %v345 = vpack.c.b16 %v333, %v332
    %v346 = vpack.c.b16 %v335, %v334
    %v347 = vpack.c.b16 %v337, %v336
    %v348 = vpack.c.b16 %v339, %v338
    %v349 = vpack.c.b16 %v341, %v340
    %358 = vmatprep.subr.bf16.mxu0 0
    %359 = vmatpush1.bf16.msra.mxu0 %v349
    %360 = vmatprep.subr.bf16.mxu0 0
    %361 = vmatpush1.bf16.msra.mxu0 %v348
    %362 = vmatprep.subr.bf16.mxu0 0
    %363 = vmatpush1.bf16.msra.mxu0 %v347
    %364 = vmatprep.subr.bf16.mxu0 0
    %365 = vmatpush1.bf16.msra.mxu0 %v346
    %366 = vmatprep.subr.bf16.mxu0 0
    %367 = vmatpush1.bf16.msra.mxu0 %v345
    %368 = vmatprep.subr.bf16.mxu0 0
    %369 = vmatpush1.bf16.msra.mxu0 %v344
    %370 = vmatprep.subr.bf16.mxu0 0
    %371 = vmatpush1.bf16.msra.mxu0 %v343
    %372 = vmatprep.subr.bf16.mxu0 0
    %373 = vmatpush1.bf16.msra.mxu0 %v342
    %374 = vmatprep.subr.bf16.mxu0 0
    %375 = vmatpush2.bf16.msra.mxu0 0
    %376 = vmatprep.subr.bf16.mxu0 0
    %377 = vmatpush2.bf16.msra.mxu0 0
    %378 = vmatprep.subr.bf16.mxu0 0
    %379 = vmatpush2.bf16.msra.mxu0 0
    %380 = vmatprep.subr.bf16.mxu0 0
    %381 = vmatpush2.bf16.msra.mxu0 0
    %382 = vmatprep.subr.bf16.mxu0 0
    %383 = vmatpush2.bf16.msra.mxu0 0
    %384 = vmatprep.subr.bf16.mxu0 0
    %385 = vmatpush2.bf16.msra.mxu0 0
    %386 = vmatprep.subr.bf16.mxu0 0
    %387 = vmatpush2.bf16.msra.mxu0 0
    %388 = vmatprep.subr.bf16.mxu0 0
    %389 = vmatpush2.bf16.msra.mxu0 0
    %390 = vmatprep.mubr.bf16.mxu0 0
    %391 = vmatmul.mubr.bf16.gmra.mxu0 %v284
    %v392 = vpop.f32.mrf.mxu0
    %v393 = vadd.f32 %v308, %v392
    %v394 = vpop.f32.mrf.mxu0
    %v395 = vpop.f32.mrf.mxu0
    %v396 = vpop.f32.mrf.mxu0
    %397 = vdwg.mxu0
    %v398 = vadd.f32 %v163, %v393
    %v399 = vmax.f32 %v398, 0.0
    %v400 = vpack.c.bf16 %v399, %v399
    %s401 = scalar_lea.vmem [#allocation5], 192
    %v402 = vld [vmem:[%s401] sm:$0xf]
    %v403 = vld [vmem:[%s401 + $0x4] sm:$0xf]
    %v404 = vld [vmem:[%s401 + $0x8] sm:$0xf]
    %v405 = vld [vmem:[%s401 + $0xc] sm:$0xf]
    %v406 = vld [vmem:[%s401 + $0x10] sm:$0xf]
    %v407 = vld [vmem:[%s401 + $0x14] sm:$0xf]
    %v408 = vld [vmem:[%s401 + $0x18] sm:$0xf]
    %v409 = vld [vmem:[%s401 + $0x1c] sm:$0xf]
    %v410 = vld [vmem:[%s401 + $0x20] sm:$0xf]
    %v411 = vld [vmem:[%s401 + $0x24] sm:$0xf]
    %v412 = vld [vmem:[%s401 + $0x28] sm:$0xf]
    %v413 = vld [vmem:[%s401 + $0x2c] sm:$0xf]
    %v414 = vld [vmem:[%s401 + $0x30] sm:$0xf]
    %v415 = vld [vmem:[%s401 + $0x34] sm:$0xf]
    %v416 = vld [vmem:[%s401 + $0x38] sm:$0xf]
    %v417 = vld [vmem:[%s401 + $0x3c] sm:$0xf]
    %s418 = scalar_lea.vmem [#allocation7], 3
    %v419 = vld [vmem:[%s418] sm:$0x1]
    %v421 = vlaneseq
    %v422 = vshrl.u32 %v421, 7
    %v423 = vsub.s32 0, %v422
    %v424 = vrot.slane %v419, %v423
    %v442 = vunpack.c.l.b16 %v402
    %v443 = vunpack.c.l.b16 %v403
    %v444 = vunpack.c.l.b16 %v404
    %v445 = vunpack.c.l.b16 %v405
    %v446 = vunpack.c.l.b16 %v406
    %v447 = vunpack.c.l.b16 %v407
    %v448 = vunpack.c.l.b16 %v408
    %v449 = vunpack.c.l.b16 %v409
    %v450 = vunpack.c.l.b16 %v410
    %v451 = vunpack.c.l.b16 %v411
    %v452 = vunpack.c.l.b16 %v412
    %v453 = vunpack.c.l.b16 %v413
    %v454 = vunpack.c.l.b16 %v414
    %v455 = vunpack.c.l.b16 %v415
    %v456 = vunpack.c.l.b16 %v416
    %v457 = vunpack.c.l.b16 %v417
    %v458 = vpack.c.b16 %v443, %v442
    %v459 = vpack.c.b16 %v445, %v444
    %v460 = vpack.c.b16 %v447, %v446
    %v461 = vpack.c.b16 %v449, %v448
    %v462 = vpack.c.b16 %v451, %v450
    %v463 = vpack.c.b16 %v453, %v452
    %v464 = vpack.c.b16 %v455, %v454
    %v465 = vpack.c.b16 %v457, %v456
    %474 = vmatprep.subr.bf16.mxu0 0
    %475 = vmatpush1.bf16.msra.mxu0 %v465
    %476 = vmatprep.subr.bf16.mxu0 0
    %477 = vmatpush1.bf16.msra.mxu0 %v464
    %478 = vmatprep.subr.bf16.mxu0 0
    %479 = vmatpush1.bf16.msra.mxu0 %v463
    %480 = vmatprep.subr.bf16.mxu0 0
    %481 = vmatpush1.bf16.msra.mxu0 %v462
    %482 = vmatprep.subr.bf16.mxu0 0
    %483 = vmatpush1.bf16.msra.mxu0 %v461
    %484 = vmatprep.subr.bf16.mxu0 0
    %485 = vmatpush1.bf16.msra.mxu0 %v460
    %486 = vmatprep.subr.bf16.mxu0 0
    %487 = vmatpush1.bf16.msra.mxu0 %v459
    %488 = vmatprep.subr.bf16.mxu0 0
    %489 = vmatpush1.bf16.msra.mxu0 %v458
    %490 = vmatprep.subr.bf16.mxu0 0
    %491 = vmatpush2.bf16.msra.mxu0 0
    %492 = vmatprep.subr.bf16.mxu0 0
    %493 = vmatpush2.bf16.msra.mxu0 0
    %494 = vmatprep.subr.bf16.mxu0 0
    %495 = vmatpush2.bf16.msra.mxu0 0
    %496 = vmatprep.subr.bf16.mxu0 0
    %497 = vmatpush2.bf16.msra.mxu0 0
    %498 = vmatprep.subr.bf16.mxu0 0
    %499 = vmatpush2.bf16.msra.mxu0 0
    %500 = vmatprep.subr.bf16.mxu0 0
    %501 = vmatpush2.bf16.msra.mxu0 0
    %502 = vmatprep.subr.bf16.mxu0 0
    %503 = vmatpush2.bf16.msra.mxu0 0
    %504 = vmatprep.subr.bf16.mxu0 0
    %505 = vmatpush2.bf16.msra.mxu0 0
    %506 = vmatprep.mubr.bf16.mxu0 0
    %507 = vmatmul.mubr.bf16.gmra.mxu0 %v400
    %v508 = vpop.f32.mrf.mxu0
    %v509 = vadd.f32 %v424, %v508
    %v510 = vpop.f32.mrf.mxu0
    %v511 = vpop.f32.mrf.mxu0
    %v512 = vpop.f32.mrf.mxu0
    %513 = vdwg.mxu0
    %v514 = vmax.f32 %v509, 0.0
    %v515 = vpack.c.bf16 %v514, %v514
    %s516 = scalar_lea.vmem [#allocation5], 256
    %v517 = vld [vmem:[%s516] sm:$0xf]
    %v518 = vld [vmem:[%s516 + $0x4] sm:$0xf]
    %v519 = vld [vmem:[%s516 + $0x8] sm:$0xf]
    %v520 = vld [vmem:[%s516 + $0xc] sm:$0xf]
    %v521 = vld [vmem:[%s516 + $0x10] sm:$0xf]
    %v522 = vld [vmem:[%s516 + $0x14] sm:$0xf]
    %v523 = vld [vmem:[%s516 + $0x18] sm:$0xf]
    %v524 = vld [vmem:[%s516 + $0x1c] sm:$0xf]
    %v525 = vld [vmem:[%s516 + $0x20] sm:$0xf]
    %v526 = vld [vmem:[%s516 + $0x24] sm:$0xf]
    %v527 = vld [vmem:[%s516 + $0x28] sm:$0xf]
    %v528 = vld [vmem:[%s516 + $0x2c] sm:$0xf]
    %v529 = vld [vmem:[%s516 + $0x30] sm:$0xf]
    %v530 = vld [vmem:[%s516 + $0x34] sm:$0xf]
    %v531 = vld [vmem:[%s516 + $0x38] sm:$0xf]
    %v532 = vld [vmem:[%s516 + $0x3c] sm:$0xf]
    %s533 = scalar_lea.vmem [#allocation7], 4
    %v534 = vld [vmem:[%s533] sm:$0x1]
    %v536 = vlaneseq
    %v537 = vshrl.u32 %v536, 7
    %v538 = vsub.s32 0, %v537
    %v539 = vrot.slane %v534, %v538
    %v557 = vunpack.c.l.b16 %v517
    %v558 = vunpack.c.l.b16 %v518
    %v559 = vunpack.c.l.b16 %v519
    %v560 = vunpack.c.l.b16 %v520
    %v561 = vunpack.c.l.b16 %v521
    %v562 = vunpack.c.l.b16 %v522
    %v563 = vunpack.c.l.b16 %v523
    %v564 = vunpack.c.l.b16 %v524
    %v565 = vunpack.c.l.b16 %v525
    %v566 = vunpack.c.l.b16 %v526
    %v567 = vunpack.c.l.b16 %v527
    %v568 = vunpack.c.l.b16 %v528
    %v569 = vunpack.c.l.b16 %v529
    %v570 = vunpack.c.l.b16 %v530
    %v571 = vunpack.c.l.b16 %v531
    %v572 = vunpack.c.l.b16 %v532
    %v573 = vpack.c.b16 %v558, %v557
    %v574 = vpack.c.b16 %v560, %v559
    %v575 = vpack.c.b16 %v562, %v561
    %v576 = vpack.c.b16 %v564, %v563
    %v577 = vpack.c.b16 %v566, %v565
    %v578 = vpack.c.b16 %v568, %v567
    %v579 = vpack.c.b16 %v570, %v569
    %v580 = vpack.c.b16 %v572, %v571
    %589 = vmatprep.subr.bf16.mxu0 0
    %590 = vmatpush1.bf16.msra.mxu0 %v580
    %591 = vmatprep.subr.bf16.mxu0 0
    %592 = vmatpush1.bf16.msra.mxu0 %v579
    %593 = vmatprep.subr.bf16.mxu0 0
    %594 = vmatpush1.bf16.msra.mxu0 %v578
    %595 = vmatprep.subr.bf16.mxu0 0
    %596 = vmatpush1.bf16.msra.mxu0 %v577
    %597 = vmatprep.subr.bf16.mxu0 0
    %598 = vmatpush1.bf16.msra.mxu0 %v576
    %599 = vmatprep.subr.bf16.mxu0 0
    %600 = vmatpush1.bf16.msra.mxu0 %v575
    %601 = vmatprep.subr.bf16.mxu0 0
    %602 = vmatpush1.bf16.msra.mxu0 %v574
    %603 = vmatprep.subr.bf16.mxu0 0
    %604 = vmatpush1.bf16.msra.mxu0 %v573
    %605 = vmatprep.subr.bf16.mxu0 0
    %606 = vmatpush2.bf16.msra.mxu0 0
    %607 = vmatprep.subr.bf16.mxu0 0
    %608 = vmatpush2.bf16.msra.mxu0 0
    %609 = vmatprep.subr.bf16.mxu0 0
    %610 = vmatpush2.bf16.msra.mxu0 0
    %611 = vmatprep.subr.bf16.mxu0 0
    %612 = vmatpush2.bf16.msra.mxu0 0
    %613 = vmatprep.subr.bf16.mxu0 0
    %614 = vmatpush2.bf16.msra.mxu0 0
    %615 = vmatprep.subr.bf16.mxu0 0
    %616 = vmatpush2.bf16.msra.mxu0 0
    %617 = vmatprep.subr.bf16.mxu0 0
    %618 = vmatpush2.bf16.msra.mxu0 0
    %619 = vmatprep.subr.bf16.mxu0 0
    %620 = vmatpush2.bf16.msra.mxu0 0
    %621 = vmatprep.mubr.bf16.mxu0 0
    %622 = vmatmul.mubr.bf16.gmra.mxu0 %v515
    %v623 = vpop.f32.mrf.mxu0
    %v624 = vadd.f32 %v539, %v623
    %v625 = vpop.f32.mrf.mxu0
    %v626 = vpop.f32.mrf.mxu0
    %v627 = vpop.f32.mrf.mxu0
    %628 = vdwg.mxu0
    %v629 = vadd.f32 %v398, %v624
    %v630 = vpack.c.bf16 %v629, %v629
    %s631 = scalar_lea.vmem [#allocation5], 320
    %v632 = vld [vmem:[%s631] sm:$0xf]
    %v633 = vld [vmem:[%s631 + $0x4] sm:$0xf]
    %v634 = vld [vmem:[%s631 + $0x8] sm:$0xf]
    %v635 = vld [vmem:[%s631 + $0xc] sm:$0xf]
    %v636 = vld [vmem:[%s631 + $0x10] sm:$0xf]
    %v637 = vld [vmem:[%s631 + $0x14] sm:$0xf]
    %v638 = vld [vmem:[%s631 + $0x18] sm:$0xf]
    %v639 = vld [vmem:[%s631 + $0x1c] sm:$0xf]
    %v640 = vld [vmem:[%s631 + $0x20] sm:$0xf]
    %v641 = vld [vmem:[%s631 + $0x24] sm:$0xf]
    %v642 = vld [vmem:[%s631 + $0x28] sm:$0xf]
    %v643 = vld [vmem:[%s631 + $0x2c] sm:$0xf]
    %v644 = vld [vmem:[%s631 + $0x30] sm:$0xf]
    %v645 = vld [vmem:[%s631 + $0x34] sm:$0xf]
    %v646 = vld [vmem:[%s631 + $0x38] sm:$0xf]
    %v647 = vld [vmem:[%s631 + $0x3c] sm:$0xf]
    %s648 = scalar_lea.vmem [#allocation7], 5
    %v649 = vld [vmem:[%s648] sm:$0x1]
    %v651 = vlaneseq
    %v652 = vshrl.u32 %v651, 7
    %v653 = vsub.s32 0, %v652
    %v654 = vrot.slane %v649, %v653
    %v672 = vunpack.c.l.b16 %v632
    %v673 = vunpack.c.l.b16 %v633
    %v674 = vunpack.c.l.b16 %v634
    %v675 = vunpack.c.l.b16 %v635
    %v676 = vunpack.c.l.b16 %v636
    %v677 = vunpack.c.l.b16 %v637
    %v678 = vunpack.c.l.b16 %v638
    %v679 = vunpack.c.l.b16 %v639
    %v680 = vunpack.c.l.b16 %v640
    %v681 = vunpack.c.l.b16 %v641
    %v682 = vunpack.c.l.b16 %v642
    %v683 = vunpack.c.l.b16 %v643
    %v684 = vunpack.c.l.b16 %v644
    %v685 = vunpack.c.l.b16 %v645
    %v686 = vunpack.c.l.b16 %v646
    %v687 = vunpack.c.l.b16 %v647
    %v688 = vpack.c.b16 %v673, %v672
    %v689 = vpack.c.b16 %v675, %v674
    %v690 = vpack.c.b16 %v677, %v676
    %v691 = vpack.c.b16 %v679, %v678
    %v692 = vpack.c.b16 %v681, %v680
    %v693 = vpack.c.b16 %v683, %v682
    %v694 = vpack.c.b16 %v685, %v684
    %v695 = vpack.c.b16 %v687, %v686
    %704 = vmatprep.subr.bf16.mxu0 0
    %705 = vmatpush1.bf16.msra.mxu0 %v695
    %706 = vmatprep.subr.bf16.mxu0 0
    %707 = vmatpush1.bf16.msra.mxu0 %v694
    %708 = vmatprep.subr.bf16.mxu0 0
    %709 = vmatpush1.bf16.msra.mxu0 %v693
    %710 = vmatprep.subr.bf16.mxu0 0
    %711 = vmatpush1.bf16.msra.mxu0 %v692
    %712 = vmatprep.subr.bf16.mxu0 0
    %713 = vmatpush1.bf16.msra.mxu0 %v691
    %714 = vmatprep.subr.bf16.mxu0 0
    %715 = vmatpush1.bf16.msra.mxu0 %v690
    %716 = vmatprep.subr.bf16.mxu0 0
    %717 = vmatpush1.bf16.msra.mxu0 %v689
    %718 = vmatprep.subr.bf16.mxu0 0
    %719 = vmatpush1.bf16.msra.mxu0 %v688
    %720 = vmatprep.subr.bf16.mxu0 0
    %721 = vmatpush2.bf16.msra.mxu0 0
    %722 = vmatprep.subr.bf16.mxu0 0
    %723 = vmatpush2.bf16.msra.mxu0 0
    %724 = vmatprep.subr.bf16.mxu0 0
    %725 = vmatpush2.bf16.msra.mxu0 0
    %726 = vmatprep.subr.bf16.mxu0 0
    %727 = vmatpush2.bf16.msra.mxu0 0
    %728 = vmatprep.subr.bf16.mxu0 0
    %729 = vmatpush2.bf16.msra.mxu0 0
    %730 = vmatprep.subr.bf16.mxu0 0
    %731 = vmatpush2.bf16.msra.mxu0 0
    %732 = vmatprep.subr.bf16.mxu0 0
    %733 = vmatpush2.bf16.msra.mxu0 0
    %734 = vmatprep.subr.bf16.mxu0 0
    %735 = vmatpush2.bf16.msra.mxu0 0
    %736 = vmatprep.mubr.bf16.mxu0 0
    %737 = vmatmul.mubr.bf16.gmra.mxu0 %v630
    %v738 = vpop.f32.mrf.mxu0
    %v739 = vadd.f32 %v654, %v738
    %v740 = vpop.f32.mrf.mxu0
    %v741 = vpop.f32.mrf.mxu0
    %v742 = vpop.f32.mrf.mxu0
    %743 = vdwg.mxu0
    %744 = vst [vmem:[#allocation8] sm:$0xff] %v739
    // Predicated region
    $region26: #{tpu_custom_call.1} parent=1 // pred_check
      _
    $region27: #{tpu_custom_call.1} parent=1 // pred_check_branch
      %746 = sbr.rel (0) target = $region29
    $region28: #{tpu_custom_call.1} parent=1 // pred_region
      %s748 = ssub.s32 128, 128
      %749 = vsyncadd [#allocation4], %s748
      %s751 = sshll.u32 [#allocation8], 4
      %s752 = int_to_ptr.vmem [resolvable:$true] %s751
      %754 = dma.vmem_to_hbm [thread:$0]  %s752, 128, %s3, [#allocation4]
    $region29: #{tpu_custom_call.1} parent=1 // pred_fallthru
      _
    // Predicated region
    $region30: #{tpu_custom_call.1} parent=1 // pred_check
      _
    $region31: #{tpu_custom_call.1} parent=1 // pred_check_branch
      %756 = sbr.rel (0) target = $region33
    $region32: #{tpu_custom_call.1} parent=1 // pred_region
      %757 = dma.done [#allocation4], 128
    $region33: #{tpu_custom_call.1} parent=1 // pred_fallthru
      _
    %758 = vsyncpa [#allocation3], 1
    %759 = vsyncpa [#allocation6], 1
    %760 = vsyncpa [#allocation4], 1

</llo_original>
